<compile_context>
chip_gen: v7x
topology: tpu7x:2x2x1
jax: 0.10.0
libtpu: 0.0.40
codegen_flags: <defaults>
</compile_context>

<pallas_src>
import functools

import jax
import jax.numpy as jnp
from jax.experimental import pallas as pl
from jax.experimental.pallas import tpu as pltpu


# ---------------------------------------------------------------------------
# Helpers: hardware budget + tile selection
# ---------------------------------------------------------------------------
def _vmem_budget_bytes():
    """~3/4 of physical VMEM per core (v7x: 48 MiB, v5e/v6e: 96 MiB)."""
    cap = 64 * 1024 * 1024
    try:
        info = pltpu.get_tpu_info()
        cap = int(getattr(info, "vmem_capacity_bytes", cap))
    except Exception:
        pass
    return max(32 * 1024 * 1024, (cap * 3) // 4)


def _divisors_desc(dim, granule):
    """Divisors of dim that are multiples of granule (descending), plus dim itself."""
    cands = {dim}
    t = granule
    while t < dim:
        if dim % t == 0:
            cands.add(t)
        t += granule
    return sorted(cands, reverse=True)


def _choose_tiles(B, D, itemsize, sub, budget):
    """Prefer tn=B (s fully resident) and tk=D (k axis collapsed), then big tm."""
    tn_cands = _divisors_desc(B, 128)
    tk_cands = _divisors_desc(D, 128)
    tm_all = _divisors_desc(B, sub)
    tm_cands = [t for t in tm_all if t <= 1024] or [min(tm_all)]

    def fits(tm, tn, tk):
        n_out = 128 if tn % 128 == 0 else tn
        need = (2 * tm * tk * itemsize        # im tiles (double-buffered)
                + 2 * tk * tn * itemsize      # s^T tiles (double-buffered)
                + 2 * 4 * (tm + tn)           # diag row/col tiles
                + 2 * tm * n_out * 4          # resident output partial
                + 2 * tm * tn * 4             # scores (+ k-accumulator if tiled)
                + 2 * tm * n_out * 4          # epilogue temporaries
                + (1 << 20))                  # compiler-internal slop
        return need <= budget

    for tn in tn_cands:
        for tk in tk_cands:
            for tm in tm_cands:
                if fits(tm, tn, tk):
                    return tm, tn, tk
    return tm_cands[-1], tn_cands[-1], tk_cands[-1]


# ---------------------------------------------------------------------------
# Prologue: lane-dense per-lane partials of diag[i] = sum_d im[i,d]*s[i,d]
# ---------------------------------------------------------------------------
def _diag_kernel(im_ref, s_ref, d_ref, *, n_l):
    prod = im_ref[...].astype(jnp.float32) * s_ref[...].astype(jnp.float32)
    d = prod.shape[1]
    acc = prod[:, 0:n_l]
    for c in range(1, d // n_l):                      # 128-lane aligned folds (VPU adds)
        acc = acc + prod[:, c * n_l:(c + 1) * n_l]
    d_ref[...] = acc


def _compute_diag(im, s, sub, budget):
    B, D = im.shape
    itemsize = jnp.dtype(im.dtype).itemsize
    n_l = 128 if D % 128 == 0 else D                  # lane-dense output width
    tm_cands = _divisors_desc(B, sub)
    tm_d = next((t for t in tm_cands
                 if 4 * t * D * itemsize + 2 * t * n_l * 4 + t * D * 4 <= budget // 2),
                tm_cands[-1])

    partials = pl.pallas_call(
        functools.partial(_diag_kernel, n_l=n_l),
        out_shape=jax.ShapeDtypeStruct((B, n_l), jnp.float32),
        grid_spec=pltpu.PrefetchScalarGridSpec(
            num_scalar_prefetch=0,
            grid=(B // tm_d,),
            in_specs=[pl.BlockSpec((tm_d, D), lambda i: (i, 0)),
                      pl.BlockSpec((tm_d, D), lambda i: (i, 0))],
            out_specs=pl.BlockSpec((tm_d, n_l), lambda i: (i, 0))),
        compiler_params=pltpu.CompilerParams(
            dimension_semantics=("parallel",),
            vmem_limit_bytes=budget),
    )(im, s)
    return jnp.sum(partials, axis=1, keepdims=True)   # (B, 1) f32, tiny XLA reduce


# ---------------------------------------------------------------------------
# Shared epilogue: chunked hinge accumulation into a lane-dense partial
# ---------------------------------------------------------------------------
def _epilogue_partial(scores, d1, d2, margin, n_out, row_base, col_base):
    tm, tn = scores.shape
    rows = row_base + jax.lax.broadcasted_iota(jnp.int32, (tm, n_out), 0)
    col_iota = jax.lax.broadcasted_iota(jnp.int32, (tm, n_out), 1)
    partial = None
    for c in range(tn // n_out):                      # unrolled, 128-lane aligned slices
        sc = scores[:, c * n_out:(c + 1) * n_out]
        d2c = d2[:, c * n_out:(c + 1) * n_out]
        cols = (col_base + c * n_out) + col_iota
        h = (jnp.maximum(margin + sc - d1, 0.0)
             + jnp.maximum(margin + sc - d2c, 0.0))
        h = jnp.where(rows == cols, 0.0, h)           # exact diagonal masking
        partial = h if partial is None else partial + h
    return partial


# ---------------------------------------------------------------------------
# Main kernels
# ---------------------------------------------------------------------------
def _loss_kernel_fused(d_row_ref, d_col_ref, im_ref, st_ref, out_ref, *,
                       margin, n_out):
    """k axis collapsed (tk == D): one MXU call per (i, j) tile, no scratch."""
    i = pl.program_id(0)
    j = pl.program_id(1)
    scores = jnp.dot(im_ref[...], st_ref[...],
                     preferred_element_type=jnp.float32)          # (tm, tn) f32
    tm, tn = scores.shape
    partial = _epilogue_partial(scores, d_row_ref[...], d_col_ref[...],
                                margin, n_out, i * tm, j * tn)

    @pl.when(j == 0)
    def _():
        out_ref[...] = partial                                     # direct write, no zero-init

    @pl.when(j != 0)
    def _():
        out_ref[...] += partial


def _loss_kernel_tiled(d_row_ref, d_col_ref, im_ref, st_ref, out_ref, acc_ref, *,
                       margin, n_out):
    """Fallback when D does not fit: accumulate scores over k in VMEM scratch."""
    i = pl.program_id(0)
    j = pl.program_id(1)
    k = pl.program_id(2)
    last_k = pl.num_programs(2) - 1

    prod = jnp.dot(im_ref[...], st_ref[...], preferred_element_type=jnp.float32)

    @pl.when(k == 0)
    def _():
        acc_ref[...] = prod                                        # direct write, no zero-init

    @pl.when(k != 0)
    def _():
        acc_ref[...] += prod

    @pl.when(jnp.logical_and(k == last_k, j == 0))
    def _():
        scores = acc_ref[...]
        tm, tn = scores.shape
        out_ref[...] = _epilogue_partial(scores, d_row_ref[...], d_col_ref[...],
                                         margin, n_out, i * tm, j * tn)

    @pl.when(jnp.logical_and(k == last_k, j != 0))
    def _():
        scores = acc_ref[...]
        tm, tn = scores.shape
        out_ref[...] += _epilogue_partial(scores, d_row_ref[...], d_col_ref[...],
                                          margin, n_out, i * tm, j * tn)


# ---------------------------------------------------------------------------
# Wrapper
# ---------------------------------------------------------------------------
def contrastive_loss(im, s, margin=0.0):
    """im: (B, D), s: (B, D). Returns scalar float32 loss (cosine_sim measure)."""
    assert im.ndim == 2 and im.shape == s.shape
    B, D = im.shape
    itemsize = jnp.dtype(im.dtype).itemsize
    sub = {1: 32, 2: 16}.get(itemsize, 8)             # dtype-aware sublane granule
    budget = _vmem_budget_bytes()
    margin_f = float(margin)

    tm, tn, tk = _choose_tiles(B, D, itemsize, sub, budget)
    # Ensure >= 2 steps on the parallel i axis (v7x megacore) when still a legal tile.
    if B // tm == 1 and B >= 2 * sub and (B // 2) % sub == 0:
        tm = B // 2
    n_out = 128 if tn % 128 == 0 else tn              # lane-dense partial-sum width

    diag = _compute_diag(im, s, sub, budget)          # (B, 1) f32
    d_col = diag.reshape(1, B)                        # (1, B) f32
    s_t = s.T                                         # one-time (D, B): standard (K, N) MXU feed

    # Actual HBM traffic for the chosen tiling (advisory for XLA scheduling).
    im_bytes = B * D * itemsize * (1 if tk == D else max(B // tn, 1))
    s_bytes = B * D * itemsize * (1 if (tk == D and tn == B) else max(B // tm, 1))
    cost_est = pl.CostEstimate(
        flops=2 * B * B * D,
        transcendentals=0,
        bytes_accessed=int(im_bytes + s_bytes + B * n_out * 4 + 2 * B * 4))

    if tk == D:
        kernel = functools.partial(_loss_kernel_fused, margin=margin_f, n_out=n_out)
        grid = (B // tm, B // tn)
        in_specs = [
            pl.BlockSpec((tm, 1), lambda i, j: (i, 0)),      # diag rows
            pl.BlockSpec((1, tn), lambda i, j: (0, j)),      # diag cols
            pl.BlockSpec((tm, D), lambda i, j: (i, 0)),      # im row block (read once per i)
            pl.BlockSpec((D, tn), lambda i, j: (0, j)),      # s^T col block (once total if tn==B)
        ]
        out_specs = pl.BlockSpec((tm, n_out), lambda i, j: (i, 0))
        scratch = ()
        dims = ("parallel", "arbitrary")
    else:
        kernel = functools.partial(_loss_kernel_tiled, margin=margin_f, n_out=n_out)
        grid = (B // tm, B // tn, D // tk)
        in_specs = [
            pl.BlockSpec((tm, 1), lambda i, j, k: (i, 0)),
            pl.BlockSpec((1, tn), lambda i, j, k: (0, j)),
            pl.BlockSpec((tm, tk), lambda i, j, k: (i, k)),
            pl.BlockSpec((tk, tn), lambda i, j, k: (k, j)),
        ]
        out_specs = pl.BlockSpec((tm, n_out), lambda i, j, k: (i, 0))
        scratch = (pltpu.VMEM((tm, tn), jnp.float32),)
        dims = ("parallel", "arbitrary", "arbitrary")

    partials = pl.pallas_call(
        kernel,
        out_shape=jax.ShapeDtypeStruct((B, n_out), jnp.float32),
        grid_spec=pltpu.PrefetchScalarGridSpec(
            num_scalar_prefetch=0,
            grid=grid,
            in_specs=in_specs,
            out_specs=out_specs,
            scratch_shapes=scratch),
        compiler_params=pltpu.CompilerParams(
            dimension_semantics=dims,
            vmem_limit_bytes=budget),
        cost_estimate=cost_est,
    )(diag, d_col, im, s_t)

    return jnp.sum(partials)


# ---------------------------------------------------------------------------
# Pure-JAX reference (mirrors the PyTorch module with defaults)
# ---------------------------------------------------------------------------
def _reference(im, s, margin=0.0):
    scores = jax.lax.dot_general(
        im, s, dimension_numbers=(((1,), (1,)), ((), ())),
        precision=jax.lax.Precision.HIGHEST,
        preferred_element_type=jnp.float32)
    diag = jnp.diag(scores).reshape(-1, 1)
    cost_s = jnp.maximum(margin + scores - diag, 0.0)
    cost_im = jnp.maximum(margin + scores - diag.T, 0.0)
    eye = jnp.eye(scores.shape[0], dtype=bool)
    cost_s = jnp.where(eye, 0.0, cost_s)
    cost_im = jnp.where(eye, 0.0, cost_im)
    return jnp.sum(cost_s) + jnp.sum(cost_im)


if __name__ == "__main__":
    key = jax.random.PRNGKey(0)
    k1, k2, k3, k4 = jax.random.split(key, 4)

    # Small shape consistent with the module (batch=8, embedding dim=32).
    im = jax.random.normal(k1, (8, 32), dtype=jnp.float32)
    s = jax.random.normal(k2, (8, 32), dtype=jnp.float32)
    loss = contrastive_loss(im, s, margin=0.0)
    jax.block_until_ready(loss)
    ref = _reference(im, s, margin=0.0)
    assert jnp.allclose(loss, ref, rtol=1e-3, atol=1e-2), (loss, ref)

    # Multi-row-block shape with nonzero margin (exercises the chunked
    # epilogue, diagonal masking across blocks, and megacore i-splitting).
    im2 = jax.random.normal(k3, (256, 384), dtype=jnp.float32)
    s2 = jax.random.normal(k4, (256, 384), dtype=jnp.float32)
    loss2 = contrastive_loss(im2, s2, margin=0.2)
    jax.block_until_ready(loss2)
    ref2 = _reference(im2, s2, margin=0.2)
    assert jnp.allclose(loss2, ref2, rtol=1e-3, atol=1e-1), (loss2, ref2)

    print("KERNEL_OK")
</pallas_src>

<mosaic_0001>
module attributes {stable_mosaic.version = 11 : i64} {
  func.func @_diag_kernel(%arg0: i32, %arg1: memref<8x32xf32, #tpu.memory_space<vmem>>, %arg2: memref<8x32xf32, #tpu.memory_space<vmem>>, %arg3: memref<8x32xf32, #tpu.memory_space<vmem>>) attributes {dimension_semantics = [#tpu.dimension_semantics<parallel>], iteration_bounds = array<i64: 1>, scalar_prefetch = 0 : i64, scratch_operands = 0 : i64, tpu.core_type = #tpu.core_type<tc>, window_params = [{transform_indices = @transform_0, window_bounds = array<i64: 8, 32>}, {transform_indices = @transform_1, window_bounds = array<i64: 8, 32>}, {transform_indices = @transform_2, window_bounds = array<i64: 8, 32>}]} {
    %c0 = arith.constant 0 : index
    %c0_0 = arith.constant 0 : index
    %0 = vector.load %arg1[%c0, %c0_0] : memref<8x32xf32, #tpu.memory_space<vmem>>, vector<8x32xf32>
    %c0_1 = arith.constant 0 : index
    %c0_2 = arith.constant 0 : index
    %1 = vector.load %arg2[%c0_1, %c0_2] : memref<8x32xf32, #tpu.memory_space<vmem>>, vector<8x32xf32>
    %2 = arith.mulf %0, %1 : vector<8x32xf32>
    %c0_3 = arith.constant 0 : index
    %c0_4 = arith.constant 0 : index
    %3 = vector.load %arg3[%c0_3, %c0_4] : memref<8x32xf32, #tpu.memory_space<vmem>>, vector<8x32xf32>
    tpu.vector_store %arg3[%c0_3, %c0_4], %2 {strides = array<i32>} : memref<8x32xf32, #tpu.memory_space<vmem>>, vector<8x32xf32>,
    return
  }
  func.func @transform_0(%arg0: i32) -> (i32, i32) {
    %c0_i32 = arith.constant 0 : i32
    %c0_i32_0 = arith.constant 0 : i32
    return %arg0, %c0_i32 : i32, i32
  }
  func.func @transform_1(%arg0: i32) -> (i32, i32) {
    %c0_i32 = arith.constant 0 : i32
    %c0_i32_0 = arith.constant 0 : i32
    return %arg0, %c0_i32 : i32, i32
  }
  func.func @transform_2(%arg0: i32) -> (i32, i32) {
    %c0_i32 = arith.constant 0 : i32
    %c0_i32_0 = arith.constant 0 : i32
    return %arg0, %c0_i32 : i32, i32
  }
}

</mosaic_0001>

<llo_original>
// kernel: tpu_custom_call.1
$region0: #{tpu_custom_call.1}
  #allocation0 [shape = 'u32[]', space=smem, size = 0x4, offset = 0x4, fixed_abs, tag = 'smem constant byte address 0x4 - core index']
  #allocation1 [shape = 'u32[144,128]{1,0:T(1,128)}', space=vmem, size = 0x12000, scoped, tag = 'internal scratch']
  %s0 = inlined_call_operand.hbm [shape: f32[8,32], index: 0, kind: input, shape index: {}]
  %s1 = inlined_call_operand.hbm [shape: f32[8,32], index: 1, kind: input, shape index: {}]
  %s2 = inlined_call_operand.hbm [shape: f32[8,32], index: 2, kind: output, shape index: {}]
  %s3 = sld [smem:[#allocation0]]
  $region26: #{tpu_custom_call.1} parent=0
    _
  %s5 = ssub.s32 1, %s3
  %s6 = scalar_select 0, %s5, %s3
  $region1: #{tpu_custom_call.1} parent=0
    #allocation2 [shape = 'u8[4096]{0}', space=vmem, size = 0x1000, scoped, tag = 'input window, operand 0, single buffered']
    #allocation3 [shape = 's32[1]{0}', space=sflag, size = 0x4, scoped, tag = 'scoped memory for tpu_custom_call.1']
    #allocation4 [shape = 's32[1]{0}', space=sflag, size = 0x4, scoped, tag = 'scoped memory for tpu_custom_call.1']
    #allocation5 [shape = 'u8[4096]{0}', space=vmem, size = 0x1000, scoped, tag = 'input window, operand 1, single buffered']
    #allocation6 [shape = 's32[1]{0}', space=sflag, size = 0x4, scoped, tag = 'scoped memory for tpu_custom_call.1']
    #allocation7 [shape = 'u8[4096]{0}', space=vmem, size = 0x1000, scoped, tag = 'output window, operand 0, single buffered']
    %7 = vsyncpa [#allocation3], 0
    %8 = vsyncpa [#allocation6], 0
    %9 = vsyncpa [#allocation4], 0
    // Predicated region
    $region2: #{tpu_custom_call.1} parent=1 // pred_check
      _
    $region3: #{tpu_custom_call.1} parent=1 // pred_check_branch
      %11 = sbr.rel (0) target = $region5
    $region4: #{tpu_custom_call.1} parent=1 // pred_region
      %s13 = ssub.s32 128, 128
      %14 = vsyncadd [#allocation3], %s13
      %s16 = sshll.u32 [#allocation2], 4
      %s17 = int_to_ptr.vmem [resolvable:$true] %s16
      %19 = dma.hbm_to_vmem [thread:$0]  %s0, 128, %s17, [#allocation3]
    $region5: #{tpu_custom_call.1} parent=1 // pred_fallthru
      _
    // Predicated region
    $region6: #{tpu_custom_call.1} parent=1 // pred_check
      _
    $region7: #{tpu_custom_call.1} parent=1 // pred_check_branch
      %21 = sbr.rel (0) target = $region9
    $region8: #{tpu_custom_call.1} parent=1 // pred_region
      %s23 = ssub.s32 128, 128
      %24 = vsyncadd [#allocation6], %s23
      %s26 = sshll.u32 [#allocation5], 4
      %s27 = int_to_ptr.vmem [resolvable:$true] %s26
      %29 = dma.hbm_to_vmem [thread:$0]  %s1, 128, %s27, [#allocation6]
    $region9: #{tpu_custom_call.1} parent=1 // pred_fallthru
      _
    // Predicated region
    $region10: #{tpu_custom_call.1} parent=1 // pred_check
      _
    $region11: #{tpu_custom_call.1} parent=1 // pred_check_branch
      %31 = sbr.rel (0) target = $region13
    $region12: #{tpu_custom_call.1} parent=1 // pred_region
      %32 = dma.done [#allocation3], 128
    $region13: #{tpu_custom_call.1} parent=1 // pred_fallthru
      _
    // Predicated region
    $region14: #{tpu_custom_call.1} parent=1 // pred_check
      _
    $region15: #{tpu_custom_call.1} parent=1 // pred_check_branch
      %34 = sbr.rel (0) target = $region17
    $region16: #{tpu_custom_call.1} parent=1 // pred_region
      %35 = dma.done [#allocation6], 128
    $region17: #{tpu_custom_call.1} parent=1 // pred_fallthru
      _
    %v36 = vld [vmem:[#allocation2] sm:$0xff]
    %v37 = vld [vmem:[#allocation5] sm:$0xff]
    %v38 = vmul.f32 %v36, %v37
    %vm39 = vcmask 261120
    %40 = vst.msk [vmem:[#allocation7] sm:$0xff] %vm39, %v38
    // Predicated region
    $region18: #{tpu_custom_call.1} parent=1 // pred_check
      _
    $region19: #{tpu_custom_call.1} parent=1 // pred_check_branch
      %42 = sbr.rel (0) target = $region21
    $region20: #{tpu_custom_call.1} parent=1 // pred_region
      %s44 = ssub.s32 128, 128
      %45 = vsyncadd [#allocation4], %s44
      %s47 = sshll.u32 [#allocation7], 4
      %s48 = int_to_ptr.vmem [resolvable:$true] %s47
      %50 = dma.vmem_to_hbm [thread:$0]  %s48, 128, %s2, [#allocation4]
    $region21: #{tpu_custom_call.1} parent=1 // pred_fallthru
      _
    // Predicated region
    $region22: #{tpu_custom_call.1} parent=1 // pred_check
      _
    $region23: #{tpu_custom_call.1} parent=1 // pred_check_branch
      %52 = sbr.rel (0) target = $region25
    $region24: #{tpu_custom_call.1} parent=1 // pred_region
      %53 = dma.done [#allocation4], 128
    $region25: #{tpu_custom_call.1} parent=1 // pred_fallthru
      _
    %54 = vsyncpa [#allocation3], 1
    %55 = vsyncpa [#allocation6], 1
    %56 = vsyncpa [#allocation4], 1

</llo_original>
